<compile_context>
chip_gen: v6e
topology: v6e:2x2x1
jax: 0.10.0
libtpu: 0.0.40
codegen_flags: <defaults>
</compile_context>

<pallas_src>
import functools
import math

import jax
import jax.numpy as jnp
from jax.experimental import pallas as pl
from jax.experimental.pallas import tpu as pltpu

_LANE = 128      # vreg lane width (last dim)
_SUBLANE = 8     # vreg sublane width (second-to-last dim)


def _round_up(v, m):
    return (v + m - 1) // m * m


def _pad2d(a, rows, cols):
    r, c = a.shape
    if r == rows and c == cols:
        return a
    return jnp.pad(a, ((0, rows - r), (0, cols - c)))


@functools.lru_cache(maxsize=None)
def _chip_config():
    """Per-generation tile size / VMEM budgets (v5e / v6e / v7x aware)."""
    kind = ""
    try:
        kind = jax.devices()[0].device_kind.lower()
    except Exception:
        pass
    try:
        vmem_cap = int(pltpu.get_tpu_info().vmem_capacity_bytes)
    except Exception:
        vmem_cap = 64 * 1024 * 1024          # conservative (v7x per-TC VMEM)
    is_v5e = ("v5 lite" in kind) or ("v5e" in kind) or ("v5lite" in kind)
    is_v7 = "v7" in kind
    # MXU-aligned row/K tile: 128 on v5e (128-wide MXU), 256 on v6e/v7x.
    base_tile = 128 if is_v5e else 256
    # Explicit scoped-VMEM limit: 3/4 of physical, capped at 96 MiB
    # (v5e/v6e: 128 MiB physical) and hard-capped at 48 MiB on v7x (64 MiB
    # per TensorCore) so tiles that compile on v6e never OOM on v7x.
    vmem_limit = min(vmem_cap * 3 // 4, 96 * 1024 * 1024)
    if is_v7:
        vmem_limit = min(vmem_limit, 48 * 1024 * 1024)
    vmem_budget = max(vmem_limit - 4 * 1024 * 1024, 8 * 1024 * 1024)
    # Fused (gridless, single-TC) threshold: generous on v5e/v6e (adj read
    # once total), small on v7x so these sizes use both TensorCores instead.
    fused_limit = vmem_cap // 8 if is_v7 else min(vmem_cap * 3 // 8,
                                                  48 * 1024 * 1024)
    return base_tile, vmem_limit, vmem_budget, fused_limit


# ---------------------------------------------------------------------------
# Kernels
# ---------------------------------------------------------------------------

def _gcn_fused_kernel(adj_ref, x_ref, w1_ref, b1_ref, w2_ref, b2_ref, out_ref,
                      *, reassociate):
    """Whole forward pass on VMEM-resident blocks (small graphs, no grid)."""
    adj = adj_ref[...]
    if reassociate:                       # nfeat < nhid: (adj @ x) @ w1
        agg = jnp.dot(adj, x_ref[...], preferred_element_type=jnp.float32)
        acc1 = jnp.dot(agg.astype(w1_ref.dtype), w1_ref[...],
                       preferred_element_type=jnp.float32)
    else:                                 # adj @ (x @ w1)
        s1 = jnp.dot(x_ref[...], w1_ref[...], preferred_element_type=jnp.float32)
        acc1 = jnp.dot(adj, s1.astype(adj.dtype),
                       preferred_element_type=jnp.float32)
    h = jnp.maximum(acc1 + b1_ref[...], 0.0)
    # TODO(synk): dropout is identity (inference / training=False); a training
    # kernel would use pltpu.prng_seed + pltpu.prng_random_bits here.
    s2 = jnp.dot(h.astype(w2_ref.dtype), w2_ref[...],
                 preferred_element_type=jnp.float32)
    out = jnp.dot(adj, s2.astype(adj.dtype), preferred_element_type=jnp.float32)
    out_ref[...] = (out + b2_ref[...]).astype(out_ref.dtype)


def _x_proj_kernel(x_ref, w1_ref, s1_ref):
    """support1 row tile = x_tile @ w1 (computed once, not once per adj tile)."""
    s1_ref[...] = jnp.dot(x_ref[...], w1_ref[...],
                          preferred_element_type=jnp.float32).astype(s1_ref.dtype)


def _layer1_preproj_kernel(adj_ref, s1_ref, b1_ref, w2_ref, s2_ref, acc_ref):
    """K-accumulated: s2[i] = relu(sum_k adj[i,k] @ s1[k] + b1) @ w2."""
    k = pl.program_id(1)

    @pl.when(k == 0)
    def _():
        acc_ref[...] = jnp.zeros_like(acc_ref)

    acc_ref[...] += jnp.dot(adj_ref[...], s1_ref[...],
                            preferred_element_type=jnp.float32)

    @pl.when(k == pl.num_programs(1) - 1)
    def _():
        h = jnp.maximum(acc_ref[...] + b1_ref[...], 0.0)
        # TODO(synk): dropout is identity (inference / training=False).
        s2_ref[...] = jnp.dot(h.astype(w2_ref.dtype), w2_ref[...],
                              preferred_element_type=jnp.float32).astype(s2_ref.dtype)


def _layer1_reassoc_kernel(adj_ref, x_ref, w1_ref, b1_ref, w2_ref, s2_ref,
                           acc_ref):
    """K-accumulated: s2[i] = relu((sum_k adj[i,k] @ x[k]) @ w1 + b1) @ w2."""
    k = pl.program_id(1)

    @pl.when(k == 0)
    def _():
        acc_ref[...] = jnp.zeros_like(acc_ref)

    acc_ref[...] += jnp.dot(adj_ref[...], x_ref[...],
                            preferred_element_type=jnp.float32)

    @pl.when(k == pl.num_programs(1) - 1)
    def _():
        acc1 = jnp.dot(acc_ref[...].astype(w1_ref.dtype), w1_ref[...],
                       preferred_element_type=jnp.float32)
        h = jnp.maximum(acc1 + b1_ref[...], 0.0)
        # TODO(synk): dropout is identity (inference / training=False).
        s2_ref[...] = jnp.dot(h.astype(w2_ref.dtype), w2_ref[...],
                              preferred_element_type=jnp.float32).astype(s2_ref.dtype)


def _layer2_kernel(adj_ref, s2_ref, b2_ref, out_ref, acc_ref):
    """K-accumulated: out[i] = sum_k adj[i,k] @ s2[k] + b2."""
    k = pl.program_id(1)

    @pl.when(k == 0)
    def _():
        acc_ref[...] = jnp.zeros_like(acc_ref)

    acc_ref[...] += jnp.dot(adj_ref[...], s2_ref[...],
                            preferred_element_type=jnp.float32)

    @pl.when(k == pl.num_programs(1) - 1)
    def _():
        out_ref[...] = (acc_ref[...] + b2_ref[...]).astype(out_ref.dtype)


# ---------------------------------------------------------------------------
# Wrappers
# ---------------------------------------------------------------------------

def gcn_forward_fused(x, adj, w1, b1, w2, b2, *, use_bf16=True):
    """Single-invocation fused kernel (everything resident in VMEM)."""
    n, nfeat = x.shape
    nhid, nclass = w1.shape[1], w2.shape[1]
    np_ = _round_up(n, _SUBLANE)
    fp, hp, cp = (_round_up(d, _LANE) for d in (nfeat, nhid, nclass))
    cdt = jnp.bfloat16 if use_bf16 else jnp.float32
    item = jnp.dtype(cdt).itemsize
    item_adj = jnp.dtype(adj.dtype).itemsize
    _, vmem_limit, _, _ = _chip_config()

    adj_p = _pad2d(adj, np_, np_)                       # keep incoming dtype
    x_p = _pad2d(x, np_, fp).astype(cdt)
    w1_p = _pad2d(w1, fp, hp).astype(cdt)
    w2_p = _pad2d(w2, hp, cp).astype(cdt)
    b1_p = _pad2d(b1.reshape(1, -1), 1, hp).astype(jnp.float32)
    b2_p = _pad2d(b2.reshape(1, -1), 1, cp).astype(jnp.float32)

    reassociate = nfeat < nhid
    flops = 2 * np_ * (np_ * (fp if reassociate else hp)
                       + fp * hp + hp * cp + np_ * cp)
    bytes_acc = (item_adj * np_ * np_ + item * (np_ * fp + fp * hp + hp * cp)
                 + 4 * (hp + cp + np_ * cp))

    vmem_spec = pl.BlockSpec(memory_space=pltpu.MemorySpace.VMEM)
    out_p = pl.pallas_call(
        functools.partial(_gcn_fused_kernel, reassociate=reassociate),
        out_shape=jax.ShapeDtypeStruct((np_, cp), jnp.float32),
        in_specs=[vmem_spec] * 6,
        out_specs=vmem_spec,
        compiler_params=pltpu.CompilerParams(vmem_limit_bytes=vmem_limit),
        cost_estimate=pl.CostEstimate(flops=int(flops), transcendentals=0,
                                      bytes_accessed=int(bytes_acc)),
    )(adj_p, x_p, w1_p, b1_p, w2_p, b2_p)
    return out_p[:n, :nclass]


def gcn_forward_tiled(x, adj, w1, b1, w2, b2, *, use_bf16=True, block_rows=None):
    """(row-tile, K-tile) accumulator grid for graphs too big for one VMEM shot.

    `adj` is streamed in whatever dtype it arrives in; pre-cast it to bf16
    once (outside the hot path) to halve HBM traffic on the dominant N^2
    stream.  `use_bf16` controls the small operands / intermediates only.
    """
    n, nfeat = x.shape
    nhid, nclass = w1.shape[1], w2.shape[1]
    fp, hp, cp = (_round_up(d, _LANE) for d in (nfeat, nhid, nclass))
    cdt = jnp.bfloat16 if use_bf16 else jnp.float32
    item = jnp.dtype(cdt).itemsize
    item_adj = jnp.dtype(adj.dtype).itemsize

    base_tile, vmem_limit, budget, _ = _chip_config()
    reassociate = nfeat < nhid           # minimize width of the N^2-scaled matmul
    mid = fp if reassociate else hp      # streamed column / accumulator width

    def step_bytes(t):
        # Default double-buffering (2x) on every streamed/resident BlockSpec,
        # plus the f32 scratch accumulator.
        return (2 * t * t * item_adj                 # adj tile
                + 2 * t * mid * item                 # x / s1 column tile
                + 2 * t * max(hp, cp) * 4            # row-tile outputs
                + t * max(mid, cp) * 4               # f32 accumulator scratch
                + 2 * (fp * hp + hp * cp) * item     # resident weights
                + 2 * (hp + cp) * 4)                 # resident biases

    if block_rows is not None:
        tile = max(_LANE, _round_up(block_rows, _LANE))
    else:
        tile = base_tile
        np_guess = _round_up(n, base_tile)
        for cand in (512, 1024):                     # fewer grid steps if it fits
            if cand <= np_guess and np_guess % cand == 0 and step_bytes(cand) <= budget:
                tile = cand
        while tile > _LANE and step_bytes(tile) > budget:
            tile //= 2

    np_ = _round_up(n, tile)
    nm = nk = np_ // tile

    adj_p = _pad2d(adj, np_, np_)                    # no dtype cast in hot path
    x_p = _pad2d(x, np_, fp).astype(cdt)
    w1_p = _pad2d(w1, fp, hp).astype(cdt)
    w2_p = _pad2d(w2, hp, cp).astype(cdt)
    b1_p = _pad2d(b1.reshape(1, -1), 1, hp).astype(jnp.float32)
    b2_p = _pad2d(b2.reshape(1, -1), 1, cp).astype(jnp.float32)

    adj_spec = pl.BlockSpec((tile, tile), lambda i, k: (i, k))
    col_spec = lambda w: pl.BlockSpec((tile, w), lambda i, k: (k, 0))
    row_out = lambda w: pl.BlockSpec((tile, w), lambda i, k: (i, 0))
    full2 = lambda a: pl.BlockSpec(a.shape, lambda i, k: (0, 0))

    params2 = pltpu.CompilerParams(
        dimension_semantics=("parallel", "arbitrary"),
        vmem_limit_bytes=vmem_limit)
    params1 = pltpu.CompilerParams(
        dimension_semantics=("parallel",), vmem_limit_bytes=vmem_limit)

    if reassociate:
        s2 = pl.pallas_call(
            _layer1_reassoc_kernel,
            grid=(nm, nk),
            out_shape=jax.ShapeDtypeStruct((np_, cp), cdt),
            in_specs=[adj_spec, col_spec(fp), full2(w1_p), full2(b1_p),
                      full2(w2_p)],
            out_specs=row_out(cp),
            scratch_shapes=[pltpu.VMEM((tile, fp), jnp.float32)],
            compiler_params=params2,
            cost_estimate=pl.CostEstimate(
                flops=int(2 * np_ * (np_ * fp + fp * hp + hp * cp)),
                transcendentals=0,
                bytes_accessed=int(item_adj * np_ * np_
                                   + item * (nm * np_ * fp + fp * hp + hp * cp
                                             + np_ * cp)
                                   + 4 * (hp + cp))),
        )(adj_p, x_p, w1_p, b1_p, w2_p)
    else:
        s1 = pl.pallas_call(
            _x_proj_kernel,
            grid=(nm,),
            out_shape=jax.ShapeDtypeStruct((np_, hp), cdt),
            in_specs=[pl.BlockSpec((tile, fp), lambda i: (i, 0)),
                      pl.BlockSpec(w1_p.shape, lambda i: (0, 0))],
            out_specs=pl.BlockSpec((tile, hp), lambda i: (i, 0)),
            compiler_params=params1,
            cost_estimate=pl.CostEstimate(
                flops=int(2 * np_ * fp * hp), transcendentals=0,
                bytes_accessed=int(item * (np_ * fp + fp * hp + np_ * hp))),
        )(x_p, w1_p)
        s2 = pl.pallas_call(
            _layer1_preproj_kernel,
            grid=(nm, nk),
            out_shape=jax.ShapeDtypeStruct((np_, cp), cdt),
            in_specs=[adj_spec, col_spec(hp), full2(b1_p), full2(w2_p)],
            out_specs=row_out(cp),
            scratch_shapes=[pltpu.VMEM((tile, hp), jnp.float32)],
            compiler_params=params2,
            cost_estimate=pl.CostEstimate(
                flops=int(2 * np_ * (np_ * hp + hp * cp)), transcendentals=0,
                bytes_accessed=int(item_adj * np_ * np_
                                   + item * (nm * np_ * hp + hp * cp + np_ * cp)
                                   + 4 * hp)),
        )(adj_p, s1, b1_p, w2_p)

    out_p = pl.pallas_call(
        _layer2_kernel,
        grid=(nm, nk),
        out_shape=jax.ShapeDtypeStruct((np_, cp), jnp.float32),
        in_specs=[adj_spec, col_spec(cp), full2(b2_p)],
        out_specs=row_out(cp),
        scratch_shapes=[pltpu.VMEM((tile, cp), jnp.float32)],
        compiler_params=params2,
        cost_estimate=pl.CostEstimate(
            flops=int(2 * np_ * np_ * cp), transcendentals=0,
            bytes_accessed=int(item_adj * np_ * np_ + item * nm * np_ * cp
                               + 4 * (cp + np_ * cp))),
    )(adj_p, s2, b2_p)
    return out_p[:n, :nclass]


def gcn_forward(x, adj, w1, b1, w2, b2, *, use_bf16=True, block_rows=None):
    """Dispatch: fused single-shot kernel for small graphs, tiled path otherwise."""
    n, nfeat = x.shape
    nhid, nclass = w1.shape[1], w2.shape[1]
    np_ = _round_up(n, _SUBLANE)
    fp, hp, cp = (_round_up(d, _LANE) for d in (nfeat, nhid, nclass))
    item = 2 if use_bf16 else 4
    item_adj = jnp.dtype(adj.dtype).itemsize
    _, _, _, fused_limit = _chip_config()
    mid = fp if nfeat < nhid else hp
    fused_bytes = (item_adj * np_ * np_
                   + item * (np_ * fp + fp * hp + hp * cp) + 4 * (hp + cp)
                   + 4 * np_ * (mid + hp + 2 * cp)       # live intermediates
                   + 4 * np_ * cp)                       # output
    if fused_bytes <= fused_limit:
        return gcn_forward_fused(x, adj, w1, b1, w2, b2, use_bf16=use_bf16)
    return gcn_forward_tiled(x, adj, w1, b1, w2, b2,
                             use_bf16=use_bf16, block_rows=block_rows)


# ---------------------------------------------------------------------------
# Init / reference / test
# ---------------------------------------------------------------------------

def init_gcn_params(key, nfeat, nhid, nclass):
    """Matches GraphConvolution.reset_parameters: uniform(-stdv, stdv),
    stdv = 1/sqrt(out_features)."""
    k1, k2, k3, k4 = jax.random.split(key, 4)
    stdv1 = 1.0 / math.sqrt(nhid)
    stdv2 = 1.0 / math.sqrt(nclass)
    w1 = jax.random.uniform(k1, (nfeat, nhid), jnp.float32, -stdv1, stdv1)
    b1 = jax.random.uniform(k2, (nhid,), jnp.float32, -stdv1, stdv1)
    w2 = jax.random.uniform(k3, (nhid, nclass), jnp.float32, -stdv2, stdv2)
    b2 = jax.random.uniform(k4, (nclass,), jnp.float32, -stdv2, stdv2)
    return w1, b1, w2, b2


def gcn_reference(x, adj, w1, b1, w2, b2):
    h = jnp.maximum(adj @ (x @ w1) + b1, 0.0)
    return adj @ (h @ w2) + b2


def _make_graph(key, n, nfeat):
    k_x, k_adj = jax.random.split(key)
    x = jax.random.normal(k_x, (n, nfeat), jnp.float32)
    a = jax.random.uniform(k_adj, (n, n), jnp.float32)
    a = (a + a.T) * 0.5 + jnp.eye(n, dtype=jnp.float32)
    adj = a / jnp.sum(a, axis=1, keepdims=True)
    return x, adj


if __name__ == "__main__":
    # NOTE on tolerances: MXU matmuls, bf16 operands, re-association and
    # zero-padding mean bitwise agreement with the canonical-order f32
    # reference is not expected; structural bugs would show as O(0.1) errors.

    # --- Case 1: toy shapes -> single fused VMEM-resident kernel (no grid) ---
    key = jax.random.PRNGKey(0)
    k_graph, k_params = jax.random.split(key)
    N, nfeat, nhid, nclass = 16, 16, 32, 8
    x, adj = _make_graph(k_graph, N, nfeat)
    w1, b1, w2, b2 = init_gcn_params(k_params, nfeat, nhid, nclass)

    out = jax.block_until_ready(gcn_forward(x, adj, w1, b1, w2, b2))
    ref = gcn_reference(x, adj, w1, b1, w2, b2)
    assert out.shape == (N, nclass)
    assert jnp.allclose(out, ref, atol=5e-2, rtol=5e-2)

    # --- Case 2: 512-node graph, f32, pre-projection order, forced 128 tiles
    #     -> exercises the (row, K) accumulator grid (4 x 4). ---
    N2, nfeat2, nhid2, nclass2 = 512, 96, 64, 10
    x2, adj2 = _make_graph(jax.random.PRNGKey(1), N2, nfeat2)
    w1b, b1b, w2b, b2b = init_gcn_params(jax.random.PRNGKey(2), nfeat2, nhid2, nclass2)

    out2 = jax.block_until_ready(
        gcn_forward_tiled(x2, adj2, w1b, b1b, w2b, b2b,
                          use_bf16=False, block_rows=128))
    ref2 = gcn_reference(x2, adj2, w1b, b1b, w2b, b2b)
    assert out2.shape == (N2, nclass2)
    assert jnp.allclose(out2, ref2, atol=1e-2, rtol=1e-2)

    # --- Case 3: re-associated layer 1, bf16 weights/activations and a
    #     bf16 adjacency pre-cast ONCE outside the hot path. ---
    nfeat3, nhid3, nclass3 = 64, 96, 12
    x3, _ = _make_graph(jax.random.PRNGKey(3), N2, nfeat3)
    w1c, b1c, w2c, b2c = init_gcn_params(jax.random.PRNGKey(4), nfeat3, nhid3, nclass3)
    adj2_bf16 = adj2.astype(jnp.bfloat16)      # preprocess-once, reuse per call

    out3 = jax.block_until_ready(
        gcn_forward_tiled(x3, adj2_bf16, w1c, b1c, w2c, b2c, block_rows=128))
    ref3 = gcn_reference(x3, adj2, w1c, b1c, w2c, b2c)
    assert out3.shape == (N2, nclass3)
    assert jnp.allclose(out3, ref3, atol=5e-2, rtol=5e-2)

    # --- Case 4: non-multiple N with automatic per-chip tile selection. ---
    N4 = 640
    x4, adj4 = _make_graph(jax.random.PRNGKey(5), N4, nfeat2)
    out4 = jax.block_until_ready(gcn_forward_tiled(x4, adj4, w1b, b1b, w2b, b2b))
    ref4 = gcn_reference(x4, adj4, w1b, b1b, w2b, b2b)
    assert out4.shape == (N4, nclass2)
    assert jnp.allclose(out4, ref4, atol=5e-2, rtol=5e-2)

    print("KERNEL_OK")
</pallas_src>

<mosaic_0001>
module attributes {stable_mosaic.version = 11 : i64} {
  func.func @_gcn_fused_kernel(%arg0: memref<16x16xf32, #tpu.memory_space<vmem>>, %arg1: memref<16x128xbf16, #tpu.memory_space<vmem>>, %arg2: memref<128x128xbf16, #tpu.memory_space<vmem>>, %arg3: memref<1x128xf32, #tpu.memory_space<vmem>>, %arg4: memref<128x128xbf16, #tpu.memory_space<vmem>>, %arg5: memref<1x128xf32, #tpu.memory_space<vmem>>, %arg6: memref<16x128xf32, #tpu.memory_space<vmem>>) attributes {dimension_semantics = [], scalar_prefetch = 0 : i64, scratch_operands = 0 : i64, tpu.core_type = #tpu.core_type<tc>} {
    %c0 = arith.constant 0 : index
    %c0_0 = arith.constant 0 : index
    %0 = vector.load %arg0[%c0, %c0_0] : memref<16x16xf32, #tpu.memory_space<vmem>>, vector<16x16xf32>
    %c0_1 = arith.constant 0 : index
    %c0_2 = arith.constant 0 : index
    %1 = vector.load %arg1[%c0_1, %c0_2] : memref<16x128xbf16, #tpu.memory_space<vmem>>, vector<16x128xbf16>
    %cst = arith.constant dense<0.000000e+00> : vector<16x128xf32>
    %2 = tpu.matmul %0, %1, %cst {dimension_numbers = #tpu.dot_dimension_numbers<[1], [0], [0], [1], [0, 0, 1, 1], [], []>} : vector<16x16xf32>, vector<16x128xbf16>, vector<16x128xf32> -> vector<16x128xf32>
    %3 = arith.truncf %2 : vector<16x128xf32> to vector<16x128xbf16>
    %c0_3 = arith.constant 0 : index
    %c0_4 = arith.constant 0 : index
    %4 = vector.load %arg2[%c0_3, %c0_4] : memref<128x128xbf16, #tpu.memory_space<vmem>>, vector<128x128xbf16>
    %cst_5 = arith.constant dense<0.000000e+00> : vector<16x128xf32>
    %5 = tpu.matmul %3, %4, %cst_5 {dimension_numbers = #tpu.dot_dimension_numbers<[1], [0], [0], [1], [0, 0, 1, 1], [], []>} : vector<16x128xbf16>, vector<128x128xbf16>, vector<16x128xf32> -> vector<16x128xf32>
    %c0_6 = arith.constant 0 : index
    %c0_7 = arith.constant 0 : index
    %6 = vector.load %arg3[%c0_6, %c0_7] : memref<1x128xf32, #tpu.memory_space<vmem>>, vector<1x128xf32>
    %7 = vector.broadcast %6 : vector<1x128xf32> to vector<16x128xf32>
    %8 = arith.addf %5, %7 : vector<16x128xf32>
    %cst_8 = arith.constant 0.000000e+00 : f32
    %9 = vector.broadcast %cst_8 : f32 to vector<16x128xf32>
    %10 = arith.maximumf %8, %9 : vector<16x128xf32>
    %11 = arith.truncf %10 : vector<16x128xf32> to vector<16x128xbf16>
    %c0_9 = arith.constant 0 : index
    %c0_10 = arith.constant 0 : index
    %12 = vector.load %arg4[%c0_9, %c0_10] : memref<128x128xbf16, #tpu.memory_space<vmem>>, vector<128x128xbf16>
    %cst_11 = arith.constant dense<0.000000e+00> : vector<16x128xf32>
    %13 = tpu.matmul %11, %12, %cst_11 {dimension_numbers = #tpu.dot_dimension_numbers<[1], [0], [0], [1], [0, 0, 1, 1], [], []>} : vector<16x128xbf16>, vector<128x128xbf16>, vector<16x128xf32> -> vector<16x128xf32>
    %cst_12 = arith.constant dense<0.000000e+00> : vector<16x128xf32>
    %14 = tpu.matmul %0, %13, %cst_12 {dimension_numbers = #tpu.dot_dimension_numbers<[1], [0], [0], [1], [0, 0, 1, 1], [], []>} : vector<16x16xf32>, vector<16x128xf32>, vector<16x128xf32> -> vector<16x128xf32>
    %c0_13 = arith.constant 0 : index
    %c0_14 = arith.constant 0 : index
    %15 = vector.load %arg5[%c0_13, %c0_14] : memref<1x128xf32, #tpu.memory_space<vmem>>, vector<1x128xf32>
    %16 = vector.broadcast %15 : vector<1x128xf32> to vector<16x128xf32>
    %17 = arith.addf %14, %16 : vector<16x128xf32>
    %c0_15 = arith.constant 0 : index
    %c0_16 = arith.constant 0 : index
    %18 = vector.load %arg6[%c0_15, %c0_16] : memref<16x128xf32, #tpu.memory_space<vmem>>, vector<16x128xf32>
    tpu.vector_store %arg6[%c0_15, %c0_16], %17 {strides = array<i32>} : memref<16x128xf32, #tpu.memory_space<vmem>>, vector<16x128xf32>,
    return
  }
}

</mosaic_0001>

<llo_original>
// kernel: tpu_custom_call.1
$region0: #{tpu_custom_call.1}
  #allocation0 [shape = 'u32[]', space=smem, size = 0x4, offset = 0x4, fixed_abs, tag = 'smem constant byte address 0x4 - core index']
  #allocation1 [shape = 'u32[144,128]{1,0:T(1,128)}', space=vmem, size = 0x12000, scoped, tag = 'internal scratch']
  %s0 = inlined_call_operand.hbm [shape: f32[16,16], index: 0, kind: input, shape index: {}]
  %s1 = inlined_call_operand.hbm [shape: bf16[16,128], index: 1, kind: input, shape index: {}]
  %s2 = inlined_call_operand.hbm [shape: bf16[128,128], index: 2, kind: input, shape index: {}]
  %s3 = inlined_call_operand.vmem [shape: f32[1,128], index: 3, kind: input, shape index: {}]
  %s4 = inlined_call_operand.hbm [shape: bf16[128,128], index: 4, kind: input, shape index: {}]
  %s5 = inlined_call_operand.vmem [shape: f32[1,128], index: 5, kind: input, shape index: {}]
  %s6 = inlined_call_operand.hbm [shape: f32[16,128], index: 6, kind: output, shape index: {}]
  %s7 = sld [smem:[#allocation0]]
  $region50: #{tpu_custom_call.1} parent=0
    _
  %s9 = ssub.s32 1, %s7
  %s10 = scalar_select 0, %s9, %s7
  $region1: #{tpu_custom_call.1} parent=0
    #allocation2 [shape = 'u8[8192]{0}', space=vmem, size = 0x2000, scoped, tag = 'input window, operand 0, single buffered']
    #allocation3 [shape = 's32[1]{0}', space=sflag, size = 0x4, scoped, tag = 'scoped memory for tpu_custom_call.1']
    #allocation4 [shape = 's32[1]{0}', space=sflag, size = 0x4, scoped, tag = 'scoped memory for tpu_custom_call.1']
    #allocation5 [shape = 'u8[4096]{0}', space=vmem, size = 0x1000, scoped, tag = 'input window, operand 1, single buffered']
    #allocation6 [shape = 's32[1]{0}', space=sflag, size = 0x4, scoped, tag = 'scoped memory for tpu_custom_call.1']
    #allocation7 [shape = 'u8[32768]{0}', space=vmem, size = 0x8000, scoped, tag = 'input window, operand 2, single buffered']
    #allocation8 [shape = 'u8[32768]{0}', space=vmem, size = 0x8000, scoped, tag = 'input window, operand 4, single buffered']
    #allocation9 [shape = 's32[1]{0}', space=sflag, size = 0x4, scoped, tag = 'scoped memory for tpu_custom_call.1']
    #allocation10 [shape = 'u8[8192]{0}', space=vmem, size = 0x2000, scoped, tag = 'output window, operand 0, single buffered']
    %11 = vsyncpa [#allocation3], 0
    %12 = vsyncpa [#allocation6], 0
    %13 = vsyncpa [#allocation9], 0
    %14 = vsyncpa [#allocation4], 0
    // Predicated region
    $region2: #{tpu_custom_call.1} parent=1 // pred_check
      _
    $region3: #{tpu_custom_call.1} parent=1 // pred_check_branch
      %16 = sbr.rel (0) target = $region5
    $region4: #{tpu_custom_call.1} parent=1 // pred_region
      %s18 = ssub.s32 256, 256
      %19 = vsyncadd [#allocation3], %s18
      %s20 = sshll.u32 [#allocation2], 4
      %s21 = int_to_ptr.vmem [resolvable:$true] %s20
      %26 = dma.hbm_to_vmem [thread:$0]  %s0, 256, %s21, [#allocation3], 128, 128, 8
    $region5: #{tpu_custom_call.1} parent=1 // pred_fallthru
      _
    // Predicated region
    $region6: #{tpu_custom_call.1} parent=1 // pred_check
      _
    $region7: #{tpu_custom_call.1} parent=1 // pred_check_branch
      %28 = sbr.rel (0) target = $region9
    $region8: #{tpu_custom_call.1} parent=1 // pred_region
      %s30 = ssub.s32 128, 128
      %31 = vsyncadd [#allocation6], %s30
      %s32 = sshll.u32 [#allocation5], 4
      %s33 = int_to_ptr.vmem [resolvable:$true] %s32
      %38 = dma.hbm_to_vmem [thread:$0]  %s1, 128, %s33, [#allocation6], 64, 64, 4
    $region9: #{tpu_custom_call.1} parent=1 // pred_fallthru
      _
    // Predicated region
    $region10: #{tpu_custom_call.1} parent=1 // pred_check
      _
    $region11: #{tpu_custom_call.1} parent=1 // pred_check_branch
      %40 = sbr.rel (0) target = $region13
    $region12: #{tpu_custom_call.1} parent=1 // pred_region
      %s42 = ssub.s32 1024, 1024
      %43 = vsyncadd [#allocation6], %s42
      %s44 = sshll.u32 [#allocation7], 4
      %s45 = int_to_ptr.vmem [resolvable:$true] %s44
      %50 = dma.hbm_to_vmem [thread:$0]  %s2, 1024, %s45, [#allocation6], 64, 64, 4
    $region13: #{tpu_custom_call.1} parent=1 // pred_fallthru
      _
    // Predicated region
    $region14: #{tpu_custom_call.1} parent=1 // pred_check
      _
    $region15: #{tpu_custom_call.1} parent=1 // pred_check_branch
      %52 = sbr.rel (0) target = $region17
    $region16: #{tpu_custom_call.1} parent=1 // pred_region
      _
    $region17: #{tpu_custom_call.1} parent=1 // pred_fallthru
      _
    // Predicated region
    $region18: #{tpu_custom_call.1} parent=1 // pred_check
      _
    $region19: #{tpu_custom_call.1} parent=1 // pred_check_branch
      %54 = sbr.rel (0) target = $region21
    $region20: #{tpu_custom_call.1} parent=1 // pred_region
      %s56 = ssub.s32 1024, 1024
      %57 = vsyncadd [#allocation9], %s56
      %s58 = sshll.u32 [#allocation8], 4
      %s59 = int_to_ptr.vmem [resolvable:$true] %s58
      %64 = dma.hbm_to_vmem [thread:$0]  %s4, 1024, %s59, [#allocation9], 64, 64, 4
    $region21: #{tpu_custom_call.1} parent=1 // pred_fallthru
      _
    // Predicated region
    $region22: #{tpu_custom_call.1} parent=1 // pred_check
      _
    $region23: #{tpu_custom_call.1} parent=1 // pred_check_branch
      %66 = sbr.rel (0) target = $region25
    $region24: #{tpu_custom_call.1} parent=1 // pred_region
      _
    $region25: #{tpu_custom_call.1} parent=1 // pred_fallthru
      _
    // Predicated region
    $region26: #{tpu_custom_call.1} parent=1 // pred_check
      _
    $region27: #{tpu_custom_call.1} parent=1 // pred_check_branch
      %68 = sbr.rel (0) target = $region29
    $region28: #{tpu_custom_call.1} parent=1 // pred_region
      %69 = dma.done [#allocation3], 256
    $region29: #{tpu_custom_call.1} parent=1 // pred_fallthru
      _
    // Predicated region
    $region30: #{tpu_custom_call.1} parent=1 // pred_check
      _
    $region31: #{tpu_custom_call.1} parent=1 // pred_check_branch
      %71 = sbr.rel (0) target = $region33
    $region32: #{tpu_custom_call.1} parent=1 // pred_region
      %72 = dma.done [#allocation6], 128
    $region33: #{tpu_custom_call.1} parent=1 // pred_fallthru
      _
    // Predicated region
    $region34: #{tpu_custom_call.1} parent=1 // pred_check
      _
    $region35: #{tpu_custom_call.1} parent=1 // pred_check_branch
      %74 = sbr.rel (0) target = $region37
    $region36: #{tpu_custom_call.1} parent=1 // pred_region
      %75 = dma.done [#allocation6], 1024
    $region37: #{tpu_custom_call.1} parent=1 // pred_fallthru
      _
    // Predicated region
    $region38: #{tpu_custom_call.1} parent=1 // pred_check
      _
    $region39: #{tpu_custom_call.1} parent=1 // pred_check_branch
      %77 = sbr.rel (0) target = $region41
    $region40: #{tpu_custom_call.1} parent=1 // pred_region
      %78 = dma.done [#allocation9], 1024
    $region41: #{tpu_custom_call.1} parent=1 // pred_fallthru
      _
    %v80 = vld [vmem:[#allocation2] sm:$0xff]
    %v81 = vld [vmem:[#allocation2 + $0x8] sm:$0xff]
    %v82 = vld [vmem:[#allocation5] sm:$0xf]
    %v83 = vld [vmem:[#allocation5 + $0x4] sm:$0xf]
    %v86 = vunpack.c.l.b16 %v82
    %v87 = vunpack.c.l.b16 %v83
    %v88 = vpack.c.b16 %v87, %v86
    %vm90 = vcmask 130048
    %v92 = vsel %vm90, %v80, 0
    %v95 = vsel %vm90, %v81, 0
    %97 = vmatprep.subr.bf16.mxu0 0
    %98 = vmatpush1.bf16.msra.mxu0 0
    %99 = vmatprep.subr.bf16.mxu0 0
    %100 = vmatpush1.bf16.msra.mxu0 0
    %101 = vmatprep.subr.bf16.mxu0 0
    %102 = vmatpush1.bf16.msra.mxu0 0
    %103 = vmatprep.subr.bf16.mxu0 0
    %104 = vmatpush1.bf16.msra.mxu0 0
    %105 = vmatprep.subr.bf16.mxu0 0
    %106 = vmatpush1.bf16.msra.mxu0 0
    %107 = vmatprep.subr.bf16.mxu0 0
    %108 = vmatpush1.bf16.msra.mxu0 0
    %109 = vmatprep.subr.bf16.mxu0 0
    %110 = vmatpush1.bf16.msra.mxu0 0
    %111 = vmatprep.subr.bf16.mxu0 0
    %112 = vmatpush1.bf16.msra.mxu0 %v88
    %113 = vmatprep.subr.bf16.mxu0 0
    %114 = vmatpush2.bf16.msra.mxu0 0
    %115 = vmatprep.subr.bf16.mxu0 0
    %116 = vmatpush2.bf16.msra.mxu0 0
    %117 = vmatprep.subr.bf16.mxu0 0
    %118 = vmatpush2.bf16.msra.mxu0 0
    %119 = vmatprep.subr.bf16.mxu0 0
    %120 = vmatpush2.bf16.msra.mxu0 0
    %121 = vmatprep.subr.bf16.mxu0 0
    %122 = vmatpush2.bf16.msra.mxu0 0
    %123 = vmatprep.subr.bf16.mxu0 0
    %124 = vmatpush2.bf16.msra.mxu0 0
    %125 = vmatprep.subr.bf16.mxu0 0
    %126 = vmatpush2.bf16.msra.mxu0 0
    %127 = vmatprep.subr.bf16.mxu0 0
    %128 = vmatpush2.bf16.msra.mxu0 0
    %129 = vmatprep.mubr.f32.mxu0 0.0
    %130 = vmatmul.mubr.f32.gmra.mxu0 %v92
    %v131 = vpop.f32.mrf.mxu0
    %v132 = vadd.f32 0.0, %v131
    %v133 = vpop.f32.mrf.mxu0
    %134 = vmatprep.mubr.f32.mxu0 0.0
    %135 = vmatmul.mubr.f32.gmra.mxu0 %v95
    %v136 = vpop.f32.mrf.mxu0
    %v137 = vadd.f32 0.0, %v136
    %v138 = vpop.f32.mrf.mxu0
    %139 = vdwg.mxu0
    %v140 = vpack.c.bf16 %v137, %v132
    %v141 = vld [vmem:[#allocation7] sm:$0xf]
    %v142 = vld [vmem:[#allocation7 + $0x4] sm:$0xf]
    %v143 = vld [vmem:[#allocation7 + $0x8] sm:$0xf]
    %v144 = vld [vmem:[#allocation7 + $0xc] sm:$0xf]
    %v145 = vld [vmem:[#allocation7 + $0x10] sm:$0xf]
    %v146 = vld [vmem:[#allocation7 + $0x14] sm:$0xf]
    %v147 = vld [vmem:[#allocation7 + $0x18] sm:$0xf]
    %v148 = vld [vmem:[#allocation7 + $0x1c] sm:$0xf]
    %v149 = vld [vmem:[#allocation7 + $0x20] sm:$0xf]
    %v150 = vld [vmem:[#allocation7 + $0x24] sm:$0xf]
    %v151 = vld [vmem:[#allocation7 + $0x28] sm:$0xf]
    %v152 = vld [vmem:[#allocation7 + $0x2c] sm:$0xf]
    %v153 = vld [vmem:[#allocation7 + $0x30] sm:$0xf]
    %v154 = vld [vmem:[#allocation7 + $0x34] sm:$0xf]
    %v155 = vld [vmem:[#allocation7 + $0x38] sm:$0xf]
    %v156 = vld [vmem:[#allocation7 + $0x3c] sm:$0xf]
    %v157 = vld [vmem:[%s3] sm:$0x1]
    %v159 = vlaneseq
    %v160 = vshrl.u32 %v159, 7
    %v161 = vsub.s32 0, %v160
    %v162 = vrot.slane %v157, %v161
    %v180 = vunpack.c.l.b16 %v141
    %v181 = vunpack.c.l.b16 %v142
    %v182 = vunpack.c.l.b16 %v143
    %v183 = vunpack.c.l.b16 %v144
    %v184 = vunpack.c.l.b16 %v145
    %v185 = vunpack.c.l.b16 %v146
    %v186 = vunpack.c.l.b16 %v147
    %v187 = vunpack.c.l.b16 %v148
    %v188 = vunpack.c.l.b16 %v149
    %v189 = vunpack.c.l.b16 %v150
    %v190 = vunpack.c.l.b16 %v151
    %v191 = vunpack.c.l.b16 %v152
    %v192 = vunpack.c.l.b16 %v153
    %v193 = vunpack.c.l.b16 %v154
    %v194 = vunpack.c.l.b16 %v155
    %v195 = vunpack.c.l.b16 %v156
    %v196 = vpack.c.b16 %v181, %v180
    %v197 = vpack.c.b16 %v183, %v182
    %v198 = vpack.c.b16 %v185, %v184
    %v199 = vpack.c.b16 %v187, %v186
    %v200 = vpack.c.b16 %v189, %v188
    %v201 = vpack.c.b16 %v191, %v190
    %v202 = vpack.c.b16 %v193, %v192
    %v203 = vpack.c.b16 %v195, %v194
    %212 = vmatprep.subr.bf16.mxu0 0
    %213 = vmatpush1.bf16.msra.mxu0 %v203
    %214 = vmatprep.subr.bf16.mxu0 0
    %215 = vmatpush1.bf16.msra.mxu0 %v202
    %216 = vmatprep.subr.bf16.mxu0 0
    %217 = vmatpush1.bf16.msra.mxu0 %v201
    %218 = vmatprep.subr.bf16.mxu0 0
    %219 = vmatpush1.bf16.msra.mxu0 %v200
    %220 = vmatprep.subr.bf16.mxu0 0
    %221 = vmatpush1.bf16.msra.mxu0 %v199
    %222 = vmatprep.subr.bf16.mxu0 0
    %223 = vmatpush1.bf16.msra.mxu0 %v198
    %224 = vmatprep.subr.bf16.mxu0 0
    %225 = vmatpush1.bf16.msra.mxu0 %v197
    %226 = vmatprep.subr.bf16.mxu0 0
    %227 = vmatpush1.bf16.msra.mxu0 %v196
    %228 = vmatprep.subr.bf16.mxu0 0
    %229 = vmatpush2.bf16.msra.mxu0 0
    %230 = vmatprep.subr.bf16.mxu0 0
    %231 = vmatpush2.bf16.msra.mxu0 0
    %232 = vmatprep.subr.bf16.mxu0 0
    %233 = vmatpush2.bf16.msra.mxu0 0
    %234 = vmatprep.subr.bf16.mxu0 0
    %235 = vmatpush2.bf16.msra.mxu0 0
    %236 = vmatprep.subr.bf16.mxu0 0
    %237 = vmatpush2.bf16.msra.mxu0 0
    %238 = vmatprep.subr.bf16.mxu0 0
    %239 = vmatpush2.bf16.msra.mxu0 0
    %240 = vmatprep.subr.bf16.mxu0 0
    %241 = vmatpush2.bf16.msra.mxu0 0
    %242 = vmatprep.subr.bf16.mxu0 0
    %243 = vmatpush2.bf16.msra.mxu0 0
    %244 = vmatprep.mubr.bf16.mxu0 0
    %245 = vmatmul.mubr.bf16.gmra.mxu0 %v140
    %v246 = vpop.f32.mrf.mxu0
    %v247 = vadd.f32 %v162, %v246
    %v248 = vpop.f32.mrf.mxu0
    %v249 = vpop.f32.mrf.mxu0
    %v250 = vadd.f32 %v162, %v249
    %v251 = vpop.f32.mrf.mxu0
    %252 = vdwg.mxu0
    %v253 = vmax.f32 %v247, 0.0
    %v254 = vmax.f32 %v250, 0.0
    %v255 = vpack.c.bf16 %v254, %v253
    %v256 = vld [vmem:[#allocation8] sm:$0xf]
    %v257 = vld [vmem:[#allocation8 + $0x4] sm:$0xf]
    %v258 = vld [vmem:[#allocation8 + $0x8] sm:$0xf]
    %v259 = vld [vmem:[#allocation8 + $0xc] sm:$0xf]
    %v260 = vld [vmem:[#allocation8 + $0x10] sm:$0xf]
    %v261 = vld [vmem:[#allocation8 + $0x14] sm:$0xf]
    %v262 = vld [vmem:[#allocation8 + $0x18] sm:$0xf]
    %v263 = vld [vmem:[#allocation8 + $0x1c] sm:$0xf]
    %v264 = vld [vmem:[#allocation8 + $0x20] sm:$0xf]
    %v265 = vld [vmem:[#allocation8 + $0x24] sm:$0xf]
    %v266 = vld [vmem:[#allocation8 + $0x28] sm:$0xf]
    %v267 = vld [vmem:[#allocation8 + $0x2c] sm:$0xf]
    %v268 = vld [vmem:[#allocation8 + $0x30] sm:$0xf]
    %v269 = vld [vmem:[#allocation8 + $0x34] sm:$0xf]
    %v270 = vld [vmem:[#allocation8 + $0x38] sm:$0xf]
    %v271 = vld [vmem:[#allocation8 + $0x3c] sm:$0xf]
    %v288 = vunpack.c.l.b16 %v256
    %v289 = vunpack.c.l.b16 %v257
    %v290 = vunpack.c.l.b16 %v258
    %v291 = vunpack.c.l.b16 %v259
    %v292 = vunpack.c.l.b16 %v260
    %v293 = vunpack.c.l.b16 %v261
    %v294 = vunpack.c.l.b16 %v262
    %v295 = vunpack.c.l.b16 %v263
    %v296 = vunpack.c.l.b16 %v264
    %v297 = vunpack.c.l.b16 %v265
    %v298 = vunpack.c.l.b16 %v266
    %v299 = vunpack.c.l.b16 %v267
    %v300 = vunpack.c.l.b16 %v268
    %v301 = vunpack.c.l.b16 %v269
    %v302 = vunpack.c.l.b16 %v270
    %v303 = vunpack.c.l.b16 %v271
    %v304 = vpack.c.b16 %v289, %v288
    %v305 = vpack.c.b16 %v291, %v290
    %v306 = vpack.c.b16 %v293, %v292
    %v307 = vpack.c.b16 %v295, %v294
    %v308 = vpack.c.b16 %v297, %v296
    %v309 = vpack.c.b16 %v299, %v298
    %v310 = vpack.c.b16 %v301, %v300
    %v311 = vpack.c.b16 %v303, %v302
    %320 = vmatprep.subr.bf16.mxu0 0
    %321 = vmatpush1.bf16.msra.mxu0 %v311
    %322 = vmatprep.subr.bf16.mxu0 0
    %323 = vmatpush1.bf16.msra.mxu0 %v310
    %324 = vmatprep.subr.bf16.mxu0 0
    %325 = vmatpush1.bf16.msra.mxu0 %v309
    %326 = vmatprep.subr.bf16.mxu0 0
    %327 = vmatpush1.bf16.msra.mxu0 %v308
    %328 = vmatprep.subr.bf16.mxu0 0
    %329 = vmatpush1.bf16.msra.mxu0 %v307
    %330 = vmatprep.subr.bf16.mxu0 0
    %331 = vmatpush1.bf16.msra.mxu0 %v306
    %332 = vmatprep.subr.bf16.mxu0 0
    %333 = vmatpush1.bf16.msra.mxu0 %v305
    %334 = vmatprep.subr.bf16.mxu0 0
    %335 = vmatpush1.bf16.msra.mxu0 %v304
    %336 = vmatprep.subr.bf16.mxu0 0
    %337 = vmatpush2.bf16.msra.mxu0 0
    %338 = vmatprep.subr.bf16.mxu0 0
    %339 = vmatpush2.bf16.msra.mxu0 0
    %340 = vmatprep.subr.bf16.mxu0 0
    %341 = vmatpush2.bf16.msra.mxu0 0
    %342 = vmatprep.subr.bf16.mxu0 0
    %343 = vmatpush2.bf16.msra.mxu0 0
    %344 = vmatprep.subr.bf16.mxu0 0
    %345 = vmatpush2.bf16.msra.mxu0 0
    %346 = vmatprep.subr.bf16.mxu0 0
    %347 = vmatpush2.bf16.msra.mxu0 0
    %348 = vmatprep.subr.bf16.mxu0 0
    %349 = vmatpush2.bf16.msra.mxu0 0
    %350 = vmatprep.subr.bf16.mxu0 0
    %351 = vmatpush2.bf16.msra.mxu0 0
    %352 = vmatprep.mubr.bf16.mxu0 0
    %353 = vmatmul.mubr.bf16.gmra.mxu0 %v255
    %v354 = vpop.f32.mrf.mxu0
    %v355 = vadd.f32 0.0, %v354
    %v356 = vpop.f32.mrf.mxu0
    %v357 = vpop.f32.mrf.mxu0
    %v358 = vadd.f32 0.0, %v357
    %v359 = vpop.f32.mrf.mxu0
    %360 = vdwg.mxu0
    %v361 = vld [vmem:[%s5] sm:$0x1]
    %v363 = vlaneseq
    %v364 = vshrl.u32 %v363, 7
    %v365 = vsub.s32 0, %v364
    %v366 = vrot.slane %v361, %v365
    %368 = vmatprep.subr.mxu0 0.0
    %369 = vmatpush1.msra.mxu0 0.0
    %370 = vmatprep.subr.mxu0 0.0
    %371 = vmatpush1.msra.mxu0 0.0
    %372 = vmatprep.subr.mxu0 0.0
    %373 = vmatpush1.msra.mxu0 0.0
    %374 = vmatprep.subr.mxu0 0.0
    %375 = vmatpush1.msra.mxu0 0.0
    %376 = vmatprep.subr.mxu0 0.0
    %377 = vmatpush1.msra.mxu0 0.0
    %378 = vmatprep.subr.mxu0 0.0
    %379 = vmatpush1.msra.mxu0 0.0
    %380 = vmatprep.subr.mxu0 0.0
    %381 = vmatpush1.msra.mxu0 0.0
    %382 = vmatprep.subr.mxu0 0.0
    %383 = vmatpush1.msra.mxu0 0.0
    %384 = vmatprep.subr.mxu0 0.0
    %385 = vmatpush1.msra.mxu0 0.0
    %386 = vmatprep.subr.mxu0 0.0
    %387 = vmatpush1.msra.mxu0 0.0
    %388 = vmatprep.subr.mxu0 0.0
    %389 = vmatpush1.msra.mxu0 0.0
    %390 = vmatprep.subr.mxu0 0.0
    %391 = vmatpush1.msra.mxu0 0.0
    %392 = vmatprep.subr.mxu0 0.0
    %393 = vmatpush1.msra.mxu0 0.0
    %394 = vmatprep.subr.mxu0 0.0
    %395 = vmatpush1.msra.mxu0 0.0
    %396 = vmatprep.subr.mxu0 0.0
    %397 = vmatpush1.msra.mxu0 %v358
    %398 = vmatprep.subr.mxu0 0.0
    %399 = vmatpush1.msra.mxu0 %v355
    %400 = vmatprep.subr.mxu0 0.0
    %401 = vmatpush2.msra.mxu0 0.0
    %402 = vmatprep.subr.mxu0 0.0
    %403 = vmatpush2.msra.mxu0 0.0
    %404 = vmatprep.subr.mxu0 0.0
    %405 = vmatpush2.msra.mxu0 0.0
    %406 = vmatprep.subr.mxu0 0.0
    %407 = vmatpush2.msra.mxu0 0.0
    %408 = vmatprep.subr.mxu0 0.0
    %409 = vmatpush2.msra.mxu0 0.0
    %410 = vmatprep.subr.mxu0 0.0
    %411 = vmatpush2.msra.mxu0 0.0
    %412 = vmatprep.subr.mxu0 0.0
    %413 = vmatpush2.msra.mxu0 0.0
    %414 = vmatprep.subr.mxu0 0.0
    %415 = vmatpush2.msra.mxu0 0.0
    %416 = vmatprep.subr.mxu0 0.0
    %417 = vmatpush2.msra.mxu0 0.0
    %418 = vmatprep.subr.mxu0 0.0
    %419 = vmatpush2.msra.mxu0 0.0
    %420 = vmatprep.subr.mxu0 0.0
    %421 = vmatpush2.msra.mxu0 0.0
    %422 = vmatprep.subr.mxu0 0.0
    %423 = vmatpush2.msra.mxu0 0.0
    %424 = vmatprep.subr.mxu0 0.0
    %425 = vmatpush2.msra.mxu0 0.0
    %426 = vmatprep.subr.mxu0 0.0
    %427 = vmatpush2.msra.mxu0 0.0
    %428 = vmatprep.subr.mxu0 0.0
    %429 = vmatpush2.msra.mxu0 0.0
    %430 = vmatprep.subr.mxu0 0.0
    %431 = vmatpush2.msra.mxu0 0.0
    %432 = vmatprep.mubr.f32.mxu0 0.0
    %433 = vmatmul.mubr.f32.gmra.mxu0 %v92
    %v434 = vpop.f32.mrf.mxu0
    %v435 = vadd.f32 %v366, %v434
    %v436 = vpop.f32.mrf.mxu0
    %437 = vmatprep.mubr.f32.mxu0 0.0
    %438 = vmatmul.mubr.f32.gmra.mxu0 %v95
    %v439 = vpop.f32.mrf.mxu0
    %v440 = vadd.f32 %v366, %v439
    %v441 = vpop.f32.mrf.mxu0
    %442 = vdwg.mxu0
    %443 = vst [vmem:[#allocation10] sm:$0xff] %v435
    %444 = vst [vmem:[#allocation10 + $0x8] sm:$0xff] %v440
    // Predicated region
    $region42: #{tpu_custom_call.1} parent=1 // pred_check
      _
    $region43: #{tpu_custom_call.1} parent=1 // pred_check_branch
      %446 = sbr.rel (0) target = $region45
    $region44: #{tpu_custom_call.1} parent=1 // pred_region
      %s448 = ssub.s32 256, 256
      %449 = vsyncadd [#allocation4], %s448
      %s450 = sshll.u32 [#allocation10], 4
      %s451 = int_to_ptr.vmem [resolvable:$true] %s450
      %456 = dma.vmem_to_hbm [thread:$0]  %s451, 256, %s6, [#allocation4], 128, 128, 8
    $region45: #{tpu_custom_call.1} parent=1 // pred_fallthru
      _
    // Predicated region
    $region46: #{tpu_custom_call.1} parent=1 // pred_check
      _
    $region47: #{tpu_custom_call.1} parent=1 // pred_check_branch
      %458 = sbr.rel (0) target = $region49
    $region48: #{tpu_custom_call.1} parent=1 // pred_region
      %459 = dma.done [#allocation4], 256
    $region49: #{tpu_custom_call.1} parent=1 // pred_fallthru
      _
    %460 = vsyncpa [#allocation3], 1
    %461 = vsyncpa [#allocation6], 1
    %462 = vsyncpa [#allocation9], 1
    %463 = vsyncpa [#allocation4], 1

</llo_original>
